<compile_context>
chip_gen: v7x
topology: tpu7x:2x2x1
jax: 0.10.0
libtpu: 0.0.40
codegen_flags: <defaults>
</compile_context>

<pallas_src>
import jax
import jax.numpy as jnp
import numpy as np
from jax.experimental import pallas as pl
from jax.experimental.pallas import tpu as pltpu


# ------------------------------- Pallas kernel -------------------------------

def _build_target_kernel(plan, batch):
    """Fused kernel for one target node.

    `plan` is a tuple of bools, one per incoming connection:
       True  -> source grid == target grid (identity path, no matmul)
       False -> bilinear resize via two small MXU matmuls.
    Ref layout per connection:
       identity: (spikes[B,Hs,Ws], w_mod[Hs,Ws])
       resize:   (spikes[B,Hs,Ws], w_mod[Hs,Ws], R_h[Ht,Hs], R_wT[Ws,Wt])
    followed by the single output ref [B,Ht,Wt].
    """
    def kernel(*refs):
        out_ref = refs[-1]
        acc = [None] * batch          # per-batch register accumulators
        idx = 0
        for identity in plan:
            s_ref = refs[idx]
            w_mod = refs[idx + 1][...]                       # (Hs, Ws)
            if identity:
                rh = rwT = None
                idx += 2
            else:
                rh = refs[idx + 2][...]                      # (Ht, Hs)
                rwT = refs[idx + 3][...]                     # (Ws, Wt)
                idx += 4
            # batch is tiny -> static unroll inside one grid step
            for b in range(batch):
                ws_b = s_ref[b] * w_mod                      # modulation folded into w_mod
                if identity:
                    contrib = ws_b                           # no resize needed
                else:
                    tmp = jnp.dot(rh, ws_b,
                                  preferred_element_type=jnp.float32)   # (Ht, Ws)
                    contrib = jnp.dot(tmp, rwT,
                                      preferred_element_type=jnp.float32)  # (Ht, Wt)
                acc[b] = contrib if acc[b] is None else acc[b] + contrib
        for b in range(batch):
            out_ref[b] = acc[b].astype(out_ref.dtype)
    return kernel


def _zero_index_map(ndim):
    return lambda i, n=ndim: (0,) * n


def axonal_fused_call(inputs, plan, batch, target_hw, cost_estimate=None):
    """One pallas_call per target node: all incoming connections, single grid step."""
    th, tw = target_hw
    kernel = _build_target_kernel(tuple(plan), batch)
    in_specs = [pl.BlockSpec(tuple(a.shape), _zero_index_map(a.ndim)) for a in inputs]
    out_spec = pl.BlockSpec((batch, th, tw), _zero_index_map(3))
    return pl.pallas_call(
        kernel,
        out_shape=jax.ShapeDtypeStruct((batch, th, tw), jnp.float32),
        grid=(1,),
        in_specs=in_specs,
        out_specs=out_spec,
        compiler_params=pltpu.CompilerParams(dimension_semantics=("arbitrary",)),
        cost_estimate=cost_estimate,
    )(*inputs)


# ------------------------------- glue / setup --------------------------------

def bilinear_resize_matrix(out_size, in_size):
    """Row-interp matrix matching torch F.interpolate(bilinear, align_corners=False)."""
    if out_size == in_size:
        return jnp.eye(in_size, dtype=jnp.float32)
    i = np.arange(out_size, dtype=np.float64)
    src = (i + 0.5) * (in_size / out_size) - 0.5
    src = np.maximum(src, 0.0)
    i0 = np.clip(np.floor(src).astype(np.int64), 0, in_size - 1)
    i1 = np.clip(i0 + 1, 0, in_size - 1)
    w1 = src - i0
    w0 = 1.0 - w1
    R = np.zeros((out_size, in_size), dtype=np.float64)
    rows = np.arange(out_size)
    np.add.at(R, (rows, i0), w0)
    np.add.at(R, (rows, i1), w1)
    return jnp.asarray(R, dtype=jnp.float32)


class AxonalConnectionsPallas:
    """JAX/Pallas reimplementation of AxonalConnections (deterministic init)."""

    def __init__(self, connection_pairs, node_grid_sizes, excitatory_ratio=0.8,
                 key=None):
        if key is None:
            key = jax.random.PRNGKey(0)
        self.connection_pairs = connection_pairs
        self.node_grid_sizes = node_grid_sizes
        self.excitatory_ratio = excitatory_ratio
        self.connection_weights = {}
        self.excitatory_masks = {}
        self.folded_weights = {}      # (1.5*E - 0.5) * W, the only weight the kernel sees
        self.resize_mats = {}         # None if grids match (identity), else (R_h, R_wT)

        for source, target, weight_scale in connection_pairs:
            if source not in node_grid_sizes or target not in node_grid_sizes:
                continue
            sh, sw = node_grid_sizes[source]
            th, tw = node_grid_sizes[target]
            key, kw, km = jax.random.split(key, 3)
            ckey = f"{source}→{target}"
            W = jax.random.normal(kw, (sh, sw), dtype=jnp.float32) * weight_scale
            self.connection_weights[ckey] = W
            mkey = f"E_{source}"
            if mkey not in self.excitatory_masks:
                mask = jax.random.uniform(km, (sh, sw)) < excitatory_ratio
                self.excitatory_masks[mkey] = mask.astype(jnp.float32)
            E = self.excitatory_masks[mkey]
            # E*s - 0.5*(1-E)*s == s*(1.5E - 0.5)  -> fold with W at init
            self.folded_weights[ckey] = (1.5 * E - 0.5) * W
            if (sh, sw) == (th, tw):
                self.resize_mats[ckey] = None                      # identity fast path
            else:
                self.resize_mats[ckey] = (
                    bilinear_resize_matrix(th, sh),                # R_h  : (Ht, Hs)
                    bilinear_resize_matrix(tw, sw).T,              # R_w^T: (Ws, Wt)
                )

    def __call__(self, node_spikes):
        # group active connections by target -> one fused pallas_call per target
        per_target = {}
        for source, target, _ in self.connection_pairs:
            if source not in node_spikes:
                continue
            ckey = f"{source}→{target}"
            if ckey not in self.folded_weights:
                continue
            per_target.setdefault(target, []).append((source, ckey))

        axonal_inputs = {}
        for target, conns in per_target.items():
            th, tw = self.node_grid_sizes[target]
            inputs, plan = [], []
            flops = 0
            batch = None
            for source, ckey in conns:
                spikes = node_spikes[source]                       # [B, Hs, Ws]
                batch = spikes.shape[0]
                sh, sw = self.node_grid_sizes[source]
                w_mod = self.folded_weights[ckey]
                rmats = self.resize_mats[ckey]
                identity = rmats is None
                plan.append(identity)
                if identity:
                    inputs += [spikes, w_mod]
                else:
                    inputs += [spikes, w_mod, rmats[0], rmats[1]]
                    flops += 2 * batch * (th * sh * sw + th * sw * tw)
                flops += 2 * batch * sh * sw                       # elementwise mod/accum
            bytes_accessed = sum(int(a.size) * a.dtype.itemsize for a in inputs)
            bytes_accessed += batch * th * tw * 4
            ce = pl.CostEstimate(flops=flops, transcendentals=0,
                                 bytes_accessed=bytes_accessed)
            axonal_inputs[target] = axonal_fused_call(
                inputs, plan, batch, (th, tw), cost_estimate=ce)
        return axonal_inputs

    # pure-JAX reference (mirrors the PyTorch math, f32-HIGHEST) for verification
    def reference(self, node_spikes):
        out = {}
        for source, target, _ in self.connection_pairs:
            if source not in node_spikes:
                continue
            ckey = f"{source}→{target}"
            if ckey not in self.connection_weights:
                continue
            s = node_spikes[source]
            E = self.excitatory_masks[f"E_{source}"]
            W = self.connection_weights[ckey]
            ws = (E * s - 0.5 * (1.0 - E) * s) * W
            rmats = self.resize_mats[ckey]
            if rmats is None:
                sig = ws
            else:
                R_h, R_wT = rmats
                sig = jnp.einsum("th,bhw,wv->btv", R_h, ws, R_wT,
                                 precision=jax.lax.Precision.HIGHEST)
            out[target] = sig if target not in out else out[target] + sig
        return out


# ----------------------------------- main -------------------------------------

if __name__ == "__main__":
    node_grid_sizes = {"A": (16, 16), "B": (8, 8), "C": (16, 16)}
    connection_pairs = [("A", "B", 0.1), ("A", "C", 0.2), ("B", "C", 0.15)]

    module = AxonalConnectionsPallas(connection_pairs, node_grid_sizes,
                                     excitatory_ratio=0.8,
                                     key=jax.random.PRNGKey(0))

    batch = 2
    k = jax.random.PRNGKey(0)
    kA, kB = jax.random.split(k)
    node_spikes = {
        "A": jax.random.bernoulli(kA, 0.3, (batch, 16, 16)).astype(jnp.float32),
        "B": jax.random.bernoulli(kB, 0.3, (batch, 8, 8)).astype(jnp.float32),
    }

    outputs = module(node_spikes)
    outputs = jax.tree_util.tree_map(jax.block_until_ready, outputs)

    ref = module.reference(node_spikes)
    # Kernel matmuls use DEFAULT MXU precision (bf16 passes, f32 accumulate);
    # the reference is full-f32 HIGHEST, so allow ~1e-3-level deviation.
    for tgt in ref:
        np.testing.assert_allclose(np.asarray(outputs[tgt]), np.asarray(ref[tgt]),
                                   rtol=1e-2, atol=5e-3)

    print("KERNEL_OK")
</pallas_src>

<mosaic_0001>
module attributes {stable_mosaic.version = 11 : i64} {
  func.func @kernel(%arg0: i32, %arg1: memref<2x16x16xf32, #tpu.memory_space<vmem>>, %arg2: memref<16x16xf32, #tpu.memory_space<vmem>>, %arg3: memref<8x16xf32, #tpu.memory_space<vmem>>, %arg4: memref<16x8xf32, #tpu.memory_space<vmem>>, %arg5: memref<2x8x8xf32, #tpu.memory_space<vmem>>) attributes {dimension_semantics = [#tpu.dimension_semantics<arbitrary>], iteration_bounds = array<i64: 1>, scalar_prefetch = 0 : i64, scratch_operands = 0 : i64, tpu.core_type = #tpu.core_type<tc>, window_params = [{pipeline_mode = #tpu.pipeline_mode<synchronous>, transform_indices = @transform_0, window_bounds = array<i64: 2, 16, 16>}, {pipeline_mode = #tpu.pipeline_mode<synchronous>, transform_indices = @transform_1, window_bounds = array<i64: 16, 16>}, {pipeline_mode = #tpu.pipeline_mode<synchronous>, transform_indices = @transform_2, window_bounds = array<i64: 8, 16>}, {pipeline_mode = #tpu.pipeline_mode<synchronous>, transform_indices = @transform_3, window_bounds = array<i64: 16, 8>}, {pipeline_mode = #tpu.pipeline_mode<synchronous>, transform_indices = @transform_4, window_bounds = array<i64: 2, 8, 8>}]} {
    %c0 = arith.constant 0 : index
    %c0_0 = arith.constant 0 : index
    %0 = vector.load %arg2[%c0, %c0_0] : memref<16x16xf32, #tpu.memory_space<vmem>>, vector<16x16xf32>
    %c0_1 = arith.constant 0 : index
    %c0_2 = arith.constant 0 : index
    %1 = vector.load %arg3[%c0_1, %c0_2] : memref<8x16xf32, #tpu.memory_space<vmem>>, vector<8x16xf32>
    %c0_3 = arith.constant 0 : index
    %c0_4 = arith.constant 0 : index
    %2 = vector.load %arg4[%c0_3, %c0_4] : memref<16x8xf32, #tpu.memory_space<vmem>>, vector<16x8xf32>
    %c0_5 = arith.constant 0 : index
    %c0_6 = arith.constant 0 : index
    %c0_7 = arith.constant 0 : index
    %3 = vector.load %arg1[%c0_5, %c0_6, %c0_7] : memref<2x16x16xf32, #tpu.memory_space<vmem>>, vector<1x16x16xf32>
    %4 = vector.shape_cast %3 : vector<1x16x16xf32> to vector<16x16xf32>
    %5 = arith.mulf %4, %0 : vector<16x16xf32>
    %cst = arith.constant dense<0.000000e+00> : vector<8x16xf32>
    %6 = tpu.matmul %1, %5, %cst {dimension_numbers = #tpu.dot_dimension_numbers<[1], [0], [0], [1], [0, 0, 1, 1], [], []>} : vector<8x16xf32>, vector<16x16xf32>, vector<8x16xf32> -> vector<8x16xf32>
    %cst_8 = arith.constant dense<0.000000e+00> : vector<8x8xf32>
    %7 = tpu.matmul %6, %2, %cst_8 {dimension_numbers = #tpu.dot_dimension_numbers<[1], [0], [0], [1], [0, 0, 1, 1], [], []>} : vector<8x16xf32>, vector<16x8xf32>, vector<8x8xf32> -> vector<8x8xf32>
    %c1 = arith.constant 1 : index
    %c0_9 = arith.constant 0 : index
    %c0_10 = arith.constant 0 : index
    %8 = vector.load %arg1[%c1, %c0_9, %c0_10] : memref<2x16x16xf32, #tpu.memory_space<vmem>>, vector<1x16x16xf32>
    %9 = vector.shape_cast %8 : vector<1x16x16xf32> to vector<16x16xf32>
    %10 = arith.mulf %9, %0 : vector<16x16xf32>
    %cst_11 = arith.constant dense<0.000000e+00> : vector<8x16xf32>
    %11 = tpu.matmul %1, %10, %cst_11 {dimension_numbers = #tpu.dot_dimension_numbers<[1], [0], [0], [1], [0, 0, 1, 1], [], []>} : vector<8x16xf32>, vector<16x16xf32>, vector<8x16xf32> -> vector<8x16xf32>
    %cst_12 = arith.constant dense<0.000000e+00> : vector<8x8xf32>
    %12 = tpu.matmul %11, %2, %cst_12 {dimension_numbers = #tpu.dot_dimension_numbers<[1], [0], [0], [1], [0, 0, 1, 1], [], []>} : vector<8x16xf32>, vector<16x8xf32>, vector<8x8xf32> -> vector<8x8xf32>
    %c0_13 = arith.constant 0 : index
    %c0_14 = arith.constant 0 : index
    %c0_15 = arith.constant 0 : index
    %13 = vector.load %arg5[%c0_13, %c0_14, %c0_15] : memref<2x8x8xf32, #tpu.memory_space<vmem>>, vector<1x8x8xf32>
    %14 = vector.shape_cast %13 : vector<1x8x8xf32> to vector<8x8xf32>
    %15 = vector.shape_cast %7 : vector<8x8xf32> to vector<1x8x8xf32>
    tpu.vector_store %arg5[%c0_13, %c0_14, %c0_15], %15 {strides = array<i32>} : memref<2x8x8xf32, #tpu.memory_space<vmem>>, vector<1x8x8xf32>,
    %c1_16 = arith.constant 1 : index
    %c0_17 = arith.constant 0 : index
    %c0_18 = arith.constant 0 : index
    %16 = vector.load %arg5[%c1_16, %c0_17, %c0_18] : memref<2x8x8xf32, #tpu.memory_space<vmem>>, vector<1x8x8xf32>
    %17 = vector.shape_cast %16 : vector<1x8x8xf32> to vector<8x8xf32>
    %18 = vector.shape_cast %12 : vector<8x8xf32> to vector<1x8x8xf32>
    tpu.vector_store %arg5[%c1_16, %c0_17, %c0_18], %18 {strides = array<i32>} : memref<2x8x8xf32, #tpu.memory_space<vmem>>, vector<1x8x8xf32>,
    return
  }
  func.func @transform_0(%arg0: i32) -> (i32, i32, i32) {
    %c0_i32 = arith.constant 0 : i32
    %c0_i32_0 = arith.constant 0 : i32
    %c0_i32_1 = arith.constant 0 : i32
    %c0_i32_2 = arith.constant 0 : i32
    return %c0_i32, %c0_i32_0, %c0_i32_1 : i32, i32, i32
  }
  func.func @transform_1(%arg0: i32) -> (i32, i32) {
    %c0_i32 = arith.constant 0 : i32
    %c0_i32_0 = arith.constant 0 : i32
    %c0_i32_1 = arith.constant 0 : i32
    return %c0_i32, %c0_i32_0 : i32, i32
  }
  func.func @transform_2(%arg0: i32) -> (i32, i32) {
    %c0_i32 = arith.constant 0 : i32
    %c0_i32_0 = arith.constant 0 : i32
    %c0_i32_1 = arith.constant 0 : i32
    return %c0_i32, %c0_i32_0 : i32, i32
  }
  func.func @transform_3(%arg0: i32) -> (i32, i32) {
    %c0_i32 = arith.constant 0 : i32
    %c0_i32_0 = arith.constant 0 : i32
    %c0_i32_1 = arith.constant 0 : i32
    return %c0_i32, %c0_i32_0 : i32, i32
  }
  func.func @transform_4(%arg0: i32) -> (i32, i32, i32) {
    %c0_i32 = arith.constant 0 : i32
    %c0_i32_0 = arith.constant 0 : i32
    %c0_i32_1 = arith.constant 0 : i32
    %c0_i32_2 = arith.constant 0 : i32
    return %c0_i32, %c0_i32_0, %c0_i32_1 : i32, i32, i32
  }
}

</mosaic_0001>

<llo_original>
// kernel: tpu_custom_call.1
$region0: #{tpu_custom_call.1}
  #allocation0 [shape = 'u32[]', space=smem, size = 0x4, offset = 0x4, fixed_abs, tag = 'smem constant byte address 0x4 - core index']
  #allocation1 [shape = 'u32[144,128]{1,0:T(1,128)}', space=vmem, size = 0x12000, scoped, tag = 'internal scratch']
  %s0 = inlined_call_operand.hbm [shape: f32[2,16,16], index: 0, kind: input, shape index: {}]
  %s1 = inlined_call_operand.vmem [shape: f32[16,16], index: 1, kind: input, shape index: {}]
  %s2 = inlined_call_operand.vmem [shape: f32[8,16], index: 2, kind: input, shape index: {}]
  %s3 = inlined_call_operand.vmem [shape: f32[16,8], index: 3, kind: input, shape index: {}]
  %s4 = inlined_call_operand.hbm [shape: f32[2,8,8], index: 4, kind: output, shape index: {}]
  %s5 = sld [smem:[#allocation0]]
  $region30: #{tpu_custom_call.1} parent=0
    _
  %s7 = ssub.s32 1, %s5
  %s8 = scalar_select 0, %s7, %s5
  $region1: #{tpu_custom_call.1} parent=0
    #allocation2 [shape = 'u8[16384]{0}', space=vmem, size = 0x4000, scoped, tag = 'input window, operand 0, single buffered']
    #allocation3 [shape = 's32[1]{0}', space=sflag, size = 0x4, scoped, tag = 'scoped memory for tpu_custom_call.1']
    #allocation4 [shape = 's32[1]{0}', space=sflag, size = 0x4, scoped, tag = 'scoped memory for tpu_custom_call.1']
    #allocation5 [shape = 'u8[8192]{0}', space=vmem, size = 0x2000, scoped, tag = 'output window, operand 0, single buffered']
    %9 = vsyncpa [#allocation3], 0
    %10 = vsyncpa [#allocation4], 0
    // Predicated region
    $region2: #{tpu_custom_call.1} parent=1 // pred_check
      _
    $region3: #{tpu_custom_call.1} parent=1 // pred_check_branch
      %12 = sbr.rel (0) target = $region5
    $region4: #{tpu_custom_call.1} parent=1 // pred_region
      %s14 = ssub.s32 512, 512
      %15 = vsyncadd [#allocation3], %s14
      %s16 = sshll.u32 [#allocation2], 4
      %s17 = int_to_ptr.vmem [resolvable:$true] %s16
      %22 = dma.hbm_to_vmem [thread:$0]  %s0, 512, %s17, [#allocation3], 128, 128, 8
    $region5: #{tpu_custom_call.1} parent=1 // pred_fallthru
      _
    // Predicated region
    $region6: #{tpu_custom_call.1} parent=1 // pred_check
      _
    $region7: #{tpu_custom_call.1} parent=1 // pred_check_branch
      %24 = sbr.rel (0) target = $region9
    $region8: #{tpu_custom_call.1} parent=1 // pred_region
      _
    $region9: #{tpu_custom_call.1} parent=1 // pred_fallthru
      _
    // Predicated region
    $region10: #{tpu_custom_call.1} parent=1 // pred_check
      _
    $region11: #{tpu_custom_call.1} parent=1 // pred_check_branch
      %26 = sbr.rel (0) target = $region13
    $region12: #{tpu_custom_call.1} parent=1 // pred_region
      _
    $region13: #{tpu_custom_call.1} parent=1 // pred_fallthru
      _
    // Predicated region
    $region14: #{tpu_custom_call.1} parent=1 // pred_check
      _
    $region15: #{tpu_custom_call.1} parent=1 // pred_check_branch
      %28 = sbr.rel (0) target = $region17
    $region16: #{tpu_custom_call.1} parent=1 // pred_region
      _
    $region17: #{tpu_custom_call.1} parent=1 // pred_fallthru
      _
    // Predicated region
    $region18: #{tpu_custom_call.1} parent=1 // pred_check
      _
    $region19: #{tpu_custom_call.1} parent=1 // pred_check_branch
      %30 = sbr.rel (0) target = $region21
    $region20: #{tpu_custom_call.1} parent=1 // pred_region
      %31 = dma.done [#allocation3], 512
    $region21: #{tpu_custom_call.1} parent=1 // pred_fallthru
      _
    %v32 = vld [vmem:[%s1] sm:$0xff]
    %v33 = vld [vmem:[%s1 + $0x8] sm:$0xff]
    %v34 = vld [vmem:[%s2] sm:$0xff]
    %v35 = vld [vmem:[%s3] sm:$0xff]
    %v36 = vld [vmem:[%s3 + $0x8] sm:$0xff]
    %v37 = vld [vmem:[#allocation2] sm:$0xff]
    %v38 = vld [vmem:[#allocation2 + $0x8] sm:$0xff]
    %v39 = vmul.f32 %v37, %v32
    %v40 = vmul.f32 %v38, %v33
    %vm41 = vcmask 130048
    %v43 = vsel %vm41, %v34, 0
    %45 = vmatprep.subr.mxu0 0.0
    %46 = vmatpush1.msra.mxu0 %v39
    %47 = vmatprep.subr.mxu0 0.0
    %48 = vmatpush1.msra.mxu0 %v40
    %49 = vmatprep.subr.mxu0 0.0
    %50 = vmatpush1.msra.mxu0 0.0
    %51 = vmatprep.subr.mxu0 0.0
    %52 = vmatpush1.msra.mxu0 0.0
    %53 = vmatprep.subr.mxu0 0.0
    %54 = vmatpush1.msra.mxu0 0.0
    %55 = vmatprep.subr.mxu0 0.0
    %56 = vmatpush1.msra.mxu0 0.0
    %57 = vmatprep.subr.mxu0 0.0
    %58 = vmatpush1.msra.mxu0 0.0
    %59 = vmatprep.subr.mxu0 0.0
    %60 = vmatpush1.msra.mxu0 0.0
    %61 = vmatprep.subr.mxu0 0.0
    %62 = vmatpush1.msra.mxu0 0.0
    %63 = vmatprep.subr.mxu0 0.0
    %64 = vmatpush1.msra.mxu0 0.0
    %65 = vmatprep.subr.mxu0 0.0
    %66 = vmatpush1.msra.mxu0 0.0
    %67 = vmatprep.subr.mxu0 0.0
    %68 = vmatpush1.msra.mxu0 0.0
    %69 = vmatprep.subr.mxu0 0.0
    %70 = vmatpush1.msra.mxu0 0.0
    %71 = vmatprep.subr.mxu0 0.0
    %72 = vmatpush1.msra.mxu0 0.0
    %73 = vmatprep.subr.mxu0 0.0
    %74 = vmatpush1.msra.mxu0 0.0
    %75 = vmatprep.subr.mxu0 0.0
    %76 = vmatpush1.msra.mxu0 0.0
    %77 = vmatprep.subr.mxu0 0.0
    %78 = vmatpush1.msra.mxu0 0.0
    %79 = vmatprep.subr.mxu0 0.0
    %80 = vmatpush1.msra.mxu0 0.0
    %81 = vmatprep.subr.mxu0 0.0
    %82 = vmatpush1.msra.mxu0 0.0
    %83 = vmatprep.subr.mxu0 0.0
    %84 = vmatpush1.msra.mxu0 0.0
    %85 = vmatprep.subr.mxu0 0.0
    %86 = vmatpush1.msra.mxu0 0.0
    %87 = vmatprep.subr.mxu0 0.0
    %88 = vmatpush1.msra.mxu0 0.0
    %89 = vmatprep.subr.mxu0 0.0
    %90 = vmatpush1.msra.mxu0 0.0
    %91 = vmatprep.subr.mxu0 0.0
    %92 = vmatpush1.msra.mxu0 0.0
    %93 = vmatprep.subr.mxu0 0.0
    %94 = vmatpush1.msra.mxu0 0.0
    %95 = vmatprep.subr.mxu0 0.0
    %96 = vmatpush1.msra.mxu0 0.0
    %97 = vmatprep.subr.mxu0 0.0
    %98 = vmatpush1.msra.mxu0 0.0
    %99 = vmatprep.subr.mxu0 0.0
    %100 = vmatpush1.msra.mxu0 0.0
    %101 = vmatprep.subr.mxu0 0.0
    %102 = vmatpush1.msra.mxu0 0.0
    %103 = vmatprep.subr.mxu0 0.0
    %104 = vmatpush1.msra.mxu0 0.0
    %105 = vmatprep.subr.mxu0 0.0
    %106 = vmatpush1.msra.mxu0 0.0
    %107 = vmatprep.subr.mxu0 0.0
    %108 = vmatpush1.msra.mxu0 0.0
    %109 = vmatprep.mubr.f32.mxu0 0.0
    %110 = vmatmul.mubr.f32.gmra.mrb[0].mxu0 %v43
    %v111 = vpop.f32.mrb[0].mxu0
    %v112 = vadd.f32 0.0, %v111
    %v113 = vpop.f32.mrb[0].mxu0
    %114 = vdwg.mxu0
    %v116 = vsel %vm41, %v112, 0
    %118 = vmatprep.subr.mxu0 0.0
    %119 = vmatpush1.msra.mxu0 %v35
    %120 = vmatprep.subr.mxu0 0.0
    %121 = vmatpush1.msra.mxu0 %v36
    %122 = vmatprep.subr.mxu0 0.0
    %123 = vmatpush1.msra.mxu0 0.0
    %124 = vmatprep.subr.mxu0 0.0
    %125 = vmatpush1.msra.mxu0 0.0
    %126 = vmatprep.subr.mxu0 0.0
    %127 = vmatpush1.msra.mxu0 0.0
    %128 = vmatprep.subr.mxu0 0.0
    %129 = vmatpush1.msra.mxu0 0.0
    %130 = vmatprep.subr.mxu0 0.0
    %131 = vmatpush1.msra.mxu0 0.0
    %132 = vmatprep.subr.mxu0 0.0
    %133 = vmatpush1.msra.mxu0 0.0
    %134 = vmatprep.subr.mxu0 0.0
    %135 = vmatpush1.msra.mxu0 0.0
    %136 = vmatprep.subr.mxu0 0.0
    %137 = vmatpush1.msra.mxu0 0.0
    %138 = vmatprep.subr.mxu0 0.0
    %139 = vmatpush1.msra.mxu0 0.0
    %140 = vmatprep.subr.mxu0 0.0
    %141 = vmatpush1.msra.mxu0 0.0
    %142 = vmatprep.subr.mxu0 0.0
    %143 = vmatpush1.msra.mxu0 0.0
    %144 = vmatprep.subr.mxu0 0.0
    %145 = vmatpush1.msra.mxu0 0.0
    %146 = vmatprep.subr.mxu0 0.0
    %147 = vmatpush1.msra.mxu0 0.0
    %148 = vmatprep.subr.mxu0 0.0
    %149 = vmatpush1.msra.mxu0 0.0
    %150 = vmatprep.subr.mxu0 0.0
    %151 = vmatpush1.msra.mxu0 0.0
    %152 = vmatprep.subr.mxu0 0.0
    %153 = vmatpush1.msra.mxu0 0.0
    %154 = vmatprep.subr.mxu0 0.0
    %155 = vmatpush1.msra.mxu0 0.0
    %156 = vmatprep.subr.mxu0 0.0
    %157 = vmatpush1.msra.mxu0 0.0
    %158 = vmatprep.subr.mxu0 0.0
    %159 = vmatpush1.msra.mxu0 0.0
    %160 = vmatprep.subr.mxu0 0.0
    %161 = vmatpush1.msra.mxu0 0.0
    %162 = vmatprep.subr.mxu0 0.0
    %163 = vmatpush1.msra.mxu0 0.0
    %164 = vmatprep.subr.mxu0 0.0
    %165 = vmatpush1.msra.mxu0 0.0
    %166 = vmatprep.subr.mxu0 0.0
    %167 = vmatpush1.msra.mxu0 0.0
    %168 = vmatprep.subr.mxu0 0.0
    %169 = vmatpush1.msra.mxu0 0.0
    %170 = vmatprep.subr.mxu0 0.0
    %171 = vmatpush1.msra.mxu0 0.0
    %172 = vmatprep.subr.mxu0 0.0
    %173 = vmatpush1.msra.mxu0 0.0
    %174 = vmatprep.subr.mxu0 0.0
    %175 = vmatpush1.msra.mxu0 0.0
    %176 = vmatprep.subr.mxu0 0.0
    %177 = vmatpush1.msra.mxu0 0.0
    %178 = vmatprep.subr.mxu0 0.0
    %179 = vmatpush1.msra.mxu0 0.0
    %180 = vmatprep.subr.mxu0 0.0
    %181 = vmatpush1.msra.mxu0 0.0
    %182 = vmatprep.mubr.f32.mxu0 0.0
    %183 = vmatmul.mubr.f32.gmra.mrb[0].mxu0 %v116
    %v184 = vpop.f32.mrb[0].mxu0
    %v185 = vadd.f32 0.0, %v184
    %v186 = vpop.f32.mrb[0].mxu0
    %187 = vdwg.mxu0
    %s188 = scalar_lea.vmem [#allocation2], 16
    %v189 = vld [vmem:[%s188] sm:$0xff]
    %v190 = vld [vmem:[%s188 + $0x8] sm:$0xff]
    %v191 = vmul.f32 %v189, %v32
    %v192 = vmul.f32 %v190, %v33
    %193 = vmatprep.subr.mxu0 0.0
    %194 = vmatpush1.msra.mxu0 %v191
    %195 = vmatprep.subr.mxu0 0.0
    %196 = vmatpush1.msra.mxu0 %v192
    %197 = vmatprep.subr.mxu0 0.0
    %198 = vmatpush1.msra.mxu0 0.0
    %199 = vmatprep.subr.mxu0 0.0
    %200 = vmatpush1.msra.mxu0 0.0
    %201 = vmatprep.subr.mxu0 0.0
    %202 = vmatpush1.msra.mxu0 0.0
    %203 = vmatprep.subr.mxu0 0.0
    %204 = vmatpush1.msra.mxu0 0.0
    %205 = vmatprep.subr.mxu0 0.0
    %206 = vmatpush1.msra.mxu0 0.0
    %207 = vmatprep.subr.mxu0 0.0
    %208 = vmatpush1.msra.mxu0 0.0
    %209 = vmatprep.subr.mxu0 0.0
    %210 = vmatpush1.msra.mxu0 0.0
    %211 = vmatprep.subr.mxu0 0.0
    %212 = vmatpush1.msra.mxu0 0.0
    %213 = vmatprep.subr.mxu0 0.0
    %214 = vmatpush1.msra.mxu0 0.0
    %215 = vmatprep.subr.mxu0 0.0
    %216 = vmatpush1.msra.mxu0 0.0
    %217 = vmatprep.subr.mxu0 0.0
    %218 = vmatpush1.msra.mxu0 0.0
    %219 = vmatprep.subr.mxu0 0.0
    %220 = vmatpush1.msra.mxu0 0.0
    %221 = vmatprep.subr.mxu0 0.0
    %222 = vmatpush1.msra.mxu0 0.0
    %223 = vmatprep.subr.mxu0 0.0
    %224 = vmatpush1.msra.mxu0 0.0
    %225 = vmatprep.subr.mxu0 0.0
    %226 = vmatpush1.msra.mxu0 0.0
    %227 = vmatprep.subr.mxu0 0.0
    %228 = vmatpush1.msra.mxu0 0.0
    %229 = vmatprep.subr.mxu0 0.0
    %230 = vmatpush1.msra.mxu0 0.0
    %231 = vmatprep.subr.mxu0 0.0
    %232 = vmatpush1.msra.mxu0 0.0
    %233 = vmatprep.subr.mxu0 0.0
    %234 = vmatpush1.msra.mxu0 0.0
    %235 = vmatprep.subr.mxu0 0.0
    %236 = vmatpush1.msra.mxu0 0.0
    %237 = vmatprep.subr.mxu0 0.0
    %238 = vmatpush1.msra.mxu0 0.0
    %239 = vmatprep.subr.mxu0 0.0
    %240 = vmatpush1.msra.mxu0 0.0
    %241 = vmatprep.subr.mxu0 0.0
    %242 = vmatpush1.msra.mxu0 0.0
    %243 = vmatprep.subr.mxu0 0.0
    %244 = vmatpush1.msra.mxu0 0.0
    %245 = vmatprep.subr.mxu0 0.0
    %246 = vmatpush1.msra.mxu0 0.0
    %247 = vmatprep.subr.mxu0 0.0
    %248 = vmatpush1.msra.mxu0 0.0
    %249 = vmatprep.subr.mxu0 0.0
    %250 = vmatpush1.msra.mxu0 0.0
    %251 = vmatprep.subr.mxu0 0.0
    %252 = vmatpush1.msra.mxu0 0.0
    %253 = vmatprep.subr.mxu0 0.0
    %254 = vmatpush1.msra.mxu0 0.0
    %255 = vmatprep.subr.mxu0 0.0
    %256 = vmatpush1.msra.mxu0 0.0
    %257 = vmatprep.mubr.f32.mxu0 0.0
    %258 = vmatmul.mubr.f32.gmra.mrb[0].mxu0 %v43
    %v259 = vpop.f32.mrb[0].mxu0
    %v260 = vadd.f32 0.0, %v259
    %v261 = vpop.f32.mrb[0].mxu0
    %262 = vdwg.mxu0
    %v264 = vsel %vm41, %v260, 0
    %266 = vmatprep.subr.mxu0 0.0
    %267 = vmatpush1.msra.mxu0 %v35
    %268 = vmatprep.subr.mxu0 0.0
    %269 = vmatpush1.msra.mxu0 %v36
    %270 = vmatprep.subr.mxu0 0.0
    %271 = vmatpush1.msra.mxu0 0.0
    %272 = vmatprep.subr.mxu0 0.0
    %273 = vmatpush1.msra.mxu0 0.0
    %274 = vmatprep.subr.mxu0 0.0
    %275 = vmatpush1.msra.mxu0 0.0
    %276 = vmatprep.subr.mxu0 0.0
    %277 = vmatpush1.msra.mxu0 0.0
    %278 = vmatprep.subr.mxu0 0.0
    %279 = vmatpush1.msra.mxu0 0.0
    %280 = vmatprep.subr.mxu0 0.0
    %281 = vmatpush1.msra.mxu0 0.0
    %282 = vmatprep.subr.mxu0 0.0
    %283 = vmatpush1.msra.mxu0 0.0
    %284 = vmatprep.subr.mxu0 0.0
    %285 = vmatpush1.msra.mxu0 0.0
    %286 = vmatprep.subr.mxu0 0.0
    %287 = vmatpush1.msra.mxu0 0.0
    %288 = vmatprep.subr.mxu0 0.0
    %289 = vmatpush1.msra.mxu0 0.0
    %290 = vmatprep.subr.mxu0 0.0
    %291 = vmatpush1.msra.mxu0 0.0
    %292 = vmatprep.subr.mxu0 0.0
    %293 = vmatpush1.msra.mxu0 0.0
    %294 = vmatprep.subr.mxu0 0.0
    %295 = vmatpush1.msra.mxu0 0.0
    %296 = vmatprep.subr.mxu0 0.0
    %297 = vmatpush1.msra.mxu0 0.0
    %298 = vmatprep.subr.mxu0 0.0
    %299 = vmatpush1.msra.mxu0 0.0
    %300 = vmatprep.subr.mxu0 0.0
    %301 = vmatpush1.msra.mxu0 0.0
    %302 = vmatprep.subr.mxu0 0.0
    %303 = vmatpush1.msra.mxu0 0.0
    %304 = vmatprep.subr.mxu0 0.0
    %305 = vmatpush1.msra.mxu0 0.0
    %306 = vmatprep.subr.mxu0 0.0
    %307 = vmatpush1.msra.mxu0 0.0
    %308 = vmatprep.subr.mxu0 0.0
    %309 = vmatpush1.msra.mxu0 0.0
    %310 = vmatprep.subr.mxu0 0.0
    %311 = vmatpush1.msra.mxu0 0.0
    %312 = vmatprep.subr.mxu0 0.0
    %313 = vmatpush1.msra.mxu0 0.0
    %314 = vmatprep.subr.mxu0 0.0
    %315 = vmatpush1.msra.mxu0 0.0
    %316 = vmatprep.subr.mxu0 0.0
    %317 = vmatpush1.msra.mxu0 0.0
    %318 = vmatprep.subr.mxu0 0.0
    %319 = vmatpush1.msra.mxu0 0.0
    %320 = vmatprep.subr.mxu0 0.0
    %321 = vmatpush1.msra.mxu0 0.0
    %322 = vmatprep.subr.mxu0 0.0
    %323 = vmatpush1.msra.mxu0 0.0
    %324 = vmatprep.subr.mxu0 0.0
    %325 = vmatpush1.msra.mxu0 0.0
    %326 = vmatprep.subr.mxu0 0.0
    %327 = vmatpush1.msra.mxu0 0.0
    %328 = vmatprep.subr.mxu0 0.0
    %329 = vmatpush1.msra.mxu0 0.0
    %330 = vmatprep.mubr.f32.mxu0 0.0
    %331 = vmatmul.mubr.f32.gmra.mrb[0].mxu0 %v264
    %v332 = vpop.f32.mrb[0].mxu0
    %v333 = vadd.f32 0.0, %v332
    %v334 = vpop.f32.mrb[0].mxu0
    %335 = vdwg.mxu0
    %vm336 = vcmask 64512
    %337 = vst.msk [vmem:[#allocation5] sm:$0xff] %vm336, %v185
    %s338 = scalar_lea.vmem [#allocation5], 8
    %339 = vst.msk [vmem:[%s338] sm:$0xff] %vm336, %v333
    // Predicated region
    $region22: #{tpu_custom_call.1} parent=1 // pred_check
      _
    $region23: #{tpu_custom_call.1} parent=1 // pred_check_branch
      %341 = sbr.rel (0) target = $region25
    $region24: #{tpu_custom_call.1} parent=1 // pred_region
      %s343 = ssub.s32 256, 256
      %344 = vsyncadd [#allocation4], %s343
      %s345 = sshll.u32 [#allocation5], 4
      %s346 = int_to_ptr.vmem [resolvable:$true] %s345
      %351 = dma.vmem_to_hbm [thread:$0]  %s346, 256, %s4, [#allocation4], 128, 128, 8
    $region25: #{tpu_custom_call.1} parent=1 // pred_fallthru
      _
    // Predicated region
    $region26: #{tpu_custom_call.1} parent=1 // pred_check
      _
    $region27: #{tpu_custom_call.1} parent=1 // pred_check_branch
      %353 = sbr.rel (0) target = $region29
    $region28: #{tpu_custom_call.1} parent=1 // pred_region
      %354 = dma.done [#allocation4], 256
    $region29: #{tpu_custom_call.1} parent=1 // pred_fallthru
      _
    %355 = vsyncpa [#allocation3], 1
    %356 = vsyncpa [#allocation4], 1

</llo_original>
